<compile_context>
chip_gen: v7x
topology: tpu7x:2x2x1
jax: 0.10.0
libtpu: 0.0.40
codegen_flags: <defaults>
</compile_context>

<pallas_src>
import functools

import jax
import jax.numpy as jnp
from jax.experimental import pallas as pl
from jax.experimental.pallas import tpu as pltpu


def _decoder_kernel(x_ref, m_ref, wt_ref, o_ref, *, n_src, n_groups, win_size, win_shift):
    """One (batch, T-tile) step: mask multiply + frame matmul for all sources.

    x_ref:  (1, C, Tt)              compute dtype (C sublanes, T lanes — PyTorch layout)
    m_ref:  (1, n_src, C, Tt)       compute dtype
    wt_ref: (K, C)                  compute dtype (transposed ConvTranspose1d weight)
    o_ref:  (1, n_src*G, S, Tt)     f32 overlap planes:
            o[s*G + j, k', t] = frames_s[t, j*S + k']   (0 where j*S + k' >= K)
    """
    K, S, G = win_size, win_shift, n_groups
    Tt = o_ref.shape[3]
    for s in range(n_src):                       # n_src is tiny & static → unrolled
        # Re-read x from VMEM per source (cheap) to keep live ranges short.
        masked = x_ref[0] * m_ref[0, s]          # (C, Tt)   VPU (bf16-native on v6e/v7x)
        # frames^T[k, t] = sum_c W[c, k] * masked[c, t]; MXU, f32 accumulation.
        frames_t = jnp.dot(wt_ref[...], masked, preferred_element_type=jnp.float32)
        for j in range(G):                       # G = ceil(K/S), typically 2
            sj = min(S, K - j * S)               # trailing partial group when K % S != 0
            plane = s * G + j
            # Single aligned, lane-dense store per plane: no output loads, no RMW,
            # no lane-offset (misaligned) stores.
            o_ref[0, plane, 0:sj, :] = frames_t[j * S:j * S + sj, :].astype(o_ref.dtype)
            if sj < S:                           # zero-fill rows beyond the partial group
                o_ref[0, plane, sj:S, :] = jnp.zeros((S - sj, Tt), o_ref.dtype)


def _choose_t_tile(T, max_tile=2048):
    """Largest T tile (multiple of 128, <= max_tile) that divides T; else the full T."""
    if T <= max_tile:
        return T
    for tt in range(max_tile - max_tile % 128, 127, -128):
        if T % tt == 0:
            return tt
    # TODO(synk): ragged T with no 128-multiple divisor <= max_tile would need a masked
    # partial last tile; fall back to a single tile for now.
    return T


def decoder_forward(x, masks, weight, *, win_size, win_shift,
                    compute_dtype=jnp.bfloat16, t_tile=None):
    """Pallas equivalent of Decoder.forward.

    x:      (B, C, T) float32
    masks:  (B, n_src, C, T) float32
    weight: (C, 1, K) float32   (ConvTranspose1d weight, bias=False, stride = win_shift)
    returns (B*n_src, L_out) float32, L_out = (T-1)*win_shift + win_size
    """
    B, C, T = x.shape
    n_src = masks.shape[1]
    K, S = win_size, win_shift
    assert weight.shape == (C, 1, K)
    G = -(-K // S)                               # ceil(K/S) overlap groups
    U = T + G - 1
    L_out = (T - 1) * S + K

    if t_tile is None:
        t_tile = _choose_t_tile(T)
    assert T % t_tile == 0, (T, t_tile)
    n_t_tiles = T // t_tile

    # bf16 storage (default) for the big operands: HBM-bound kernel → ~2x fewer bytes.
    # Matmul accumulates in f32; output / overlap-add stay f32.
    xc = x.astype(compute_dtype)
    mc = masks.astype(compute_dtype)
    wT = jnp.transpose(weight[:, 0, :]).astype(compute_dtype)     # (K, C), tiny, one-time

    kernel = functools.partial(_decoder_kernel, n_src=n_src, n_groups=G,
                               win_size=K, win_shift=S)

    in_itemsize = jnp.dtype(compute_dtype).itemsize
    blk_bytes = (C * t_tile * in_itemsize                # x block
                 + n_src * C * t_tile * in_itemsize      # masks block
                 + n_src * G * S * t_tile * 4)           # output block (f32)
    vmem_limit = int(min(max(2 * blk_bytes + K * C * in_itemsize + (8 << 20),
                             32 << 20), 96 << 20))

    flops = 2 * B * n_src * K * C * T + B * n_src * C * T
    bytes_accessed = (in_itemsize * (B * C * T + B * n_src * C * T + K * C)
                      + 4 * B * n_src * G * S * T)

    planes = pl.pallas_call(
        kernel,
        out_shape=jax.ShapeDtypeStruct((B, n_src * G, S, T), jnp.float32),
        grid=(B, n_t_tiles),
        in_specs=[
            pl.BlockSpec((1, C, t_tile), lambda b, t: (b, 0, t)),             # x
            pl.BlockSpec((1, n_src, C, t_tile), lambda b, t: (b, 0, 0, t)),   # masks
            pl.BlockSpec((K, C), lambda b, t: (0, 0)),                        # weight (resident)
        ],
        out_specs=pl.BlockSpec((1, n_src * G, S, t_tile), lambda b, t: (b, 0, 0, t)),
        compiler_params=pltpu.CompilerParams(
            dimension_semantics=("parallel", "parallel"),   # halo-free planes → fully parallel
            vmem_limit_bytes=vmem_limit),
        cost_estimate=pl.CostEstimate(flops=flops, transcendentals=0,
                                      bytes_accessed=bytes_accessed),
    )(xc, mc, wT)

    # Fold the G overlap planes and finish layout plumbing in XLA on the (small) output:
    # out^T[k', u] = sum_j plane[j][k', u - j];   all sums in f32.
    N = B * n_src
    pf = planes.reshape(N, G, S, T)
    out_t = jnp.zeros((N, S, U), jnp.float32)
    for j in range(G):
        out_t = out_t.at[:, :, j:j + T].add(pf[:, j])
    out = jnp.transpose(out_t, (0, 2, 1)).reshape(N, U * S)[:, :L_out]
    return out


def decoder_reference(x, masks, weight, *, win_size, win_shift):
    """Pure-JAX reference reproducing the PyTorch module semantics (f32 throughout)."""
    B, C, T = x.shape
    n_src = masks.shape[1]
    K, S = win_size, win_shift
    L = (T - 1) * S + K
    masked = (x[:, None, :, :] * masks).reshape(B * n_src, C, T)
    frames = jnp.einsum('nct,ck->ntk', masked, weight[:, 0, :])       # (N, T, K)
    idx = (jnp.arange(T)[:, None] * S + jnp.arange(K)[None, :]).reshape(-1)
    out = jax.vmap(
        lambda f: jnp.zeros((L,), jnp.float32).at[idx].add(f.reshape(-1)))(frames)
    return out


if __name__ == "__main__":
    key = jax.random.PRNGKey(0)

    def run_case(cid, B, n_src, C, T, K, S, compute_dtype, t_tile=None, rel_tol=1e-3):
        kx, km, kw = jax.random.split(jax.random.fold_in(key, cid), 3)
        x = jax.random.normal(kx, (B, C, T), dtype=jnp.float32)
        masks = jax.random.uniform(km, (B, n_src, C, T), dtype=jnp.float32)
        weight = jax.random.normal(kw, (C, 1, K), dtype=jnp.float32) * 0.1

        out = decoder_forward(x, masks, weight, win_size=K, win_shift=S,
                              compute_dtype=compute_dtype, t_tile=t_tile)
        out = jax.block_until_ready(out)

        ref = decoder_reference(x, masks, weight, win_size=K, win_shift=S)
        assert out.shape == (B * n_src, (T - 1) * S + K), (cid, out.shape)
        scale = float(jnp.max(jnp.abs(ref))) + 1e-6
        err = float(jnp.max(jnp.abs(out - ref)))
        assert err <= rel_tol * scale, (cid, err, rel_tol * scale)

    # 1) small demo shapes, f32 storage (tight check)
    run_case(0, B=2, n_src=2, C=32, T=8, K=16, S=8,
             compute_dtype=jnp.float32, rel_tol=1e-3)
    # 2) same shapes, bf16 storage (the default performance path)
    run_case(1, B=2, n_src=2, C=32, T=8, K=16, S=8,
             compute_dtype=jnp.bfloat16, rel_tol=5e-2)
    # 3) K % S != 0 (trailing partial overlap group) + T-tiled grid (2 tiles), f32
    run_case(2, B=2, n_src=2, C=32, T=256, K=20, S=8,
             compute_dtype=jnp.float32, t_tile=128, rel_tol=1e-3)
    # 4) same, bf16 storage
    run_case(3, B=2, n_src=2, C=32, T=256, K=20, S=8,
             compute_dtype=jnp.bfloat16, t_tile=128, rel_tol=5e-2)

    print("KERNEL_OK")
</pallas_src>

<mosaic_0001>
module attributes {stable_mosaic.version = 11 : i64} {
  func.func @_decoder_kernel(%arg0: i32, %arg1: i32, %arg2: memref<1x32x8xf32, #tpu.memory_space<vmem>>, %arg3: memref<1x2x32x8xf32, #tpu.memory_space<vmem>>, %arg4: memref<16x32xf32, #tpu.memory_space<vmem>>, %arg5: memref<1x4x8x8xf32, #tpu.memory_space<vmem>>) attributes {dimension_semantics = [#tpu.dimension_semantics<parallel>, #tpu.dimension_semantics<parallel>], iteration_bounds = array<i64: 2, 1>, scalar_prefetch = 0 : i64, scratch_operands = 0 : i64, tpu.core_type = #tpu.core_type<tc>, window_params = [{transform_indices = @transform_0, window_bounds = array<i64: 1, 32, 8>}, {transform_indices = @transform_1, window_bounds = array<i64: 1, 2, 32, 8>}, {pipeline_mode = #tpu.pipeline_mode<synchronous>, transform_indices = @transform_2, window_bounds = array<i64: 16, 32>}, {transform_indices = @transform_3, window_bounds = array<i64: 1, 4, 8, 8>}]} {
    %c0 = arith.constant 0 : index
    %c0_0 = arith.constant 0 : index
    %c0_1 = arith.constant 0 : index
    %0 = vector.load %arg2[%c0, %c0_0, %c0_1] : memref<1x32x8xf32, #tpu.memory_space<vmem>>, vector<1x32x8xf32>
    %1 = vector.shape_cast %0 : vector<1x32x8xf32> to vector<32x8xf32>
    %c0_2 = arith.constant 0 : index
    %c0_3 = arith.constant 0 : index
    %c0_4 = arith.constant 0 : index
    %c0_5 = arith.constant 0 : index
    %2 = vector.load %arg3[%c0_2, %c0_3, %c0_4, %c0_5] : memref<1x2x32x8xf32, #tpu.memory_space<vmem>>, vector<1x1x32x8xf32>
    %3 = vector.shape_cast %2 : vector<1x1x32x8xf32> to vector<32x8xf32>
    %4 = arith.mulf %1, %3 : vector<32x8xf32>
    %c0_6 = arith.constant 0 : index
    %c0_7 = arith.constant 0 : index
    %5 = vector.load %arg4[%c0_6, %c0_7] : memref<16x32xf32, #tpu.memory_space<vmem>>, vector<16x32xf32>
    %cst = arith.constant dense<0.000000e+00> : vector<16x8xf32>
    %6 = tpu.matmul %5, %4, %cst {dimension_numbers = #tpu.dot_dimension_numbers<[1], [0], [0], [1], [0, 0, 1, 1], [], []>} : vector<16x32xf32>, vector<32x8xf32>, vector<16x8xf32> -> vector<16x8xf32>
    %7 = vector.extract_strided_slice %6 {offsets = [0, 0], sizes = [8, 8], strides = [1, 1]} : vector<16x8xf32> to vector<8x8xf32>
    %c0_8 = arith.constant 0 : index
    %c0_9 = arith.constant 0 : index
    %c0_10 = arith.constant 0 : index
    %c0_11 = arith.constant 0 : index
    %8 = vector.load %arg5[%c0_8, %c0_9, %c0_10, %c0_11] : memref<1x4x8x8xf32, #tpu.memory_space<vmem>>, vector<1x1x8x8xf32>
    %9 = vector.shape_cast %8 : vector<1x1x8x8xf32> to vector<8x8xf32>
    %10 = vector.shape_cast %7 : vector<8x8xf32> to vector<1x1x8x8xf32>
    tpu.vector_store %arg5[%c0_8, %c0_9, %c0_10, %c0_11], %10 {strides = array<i32>} : memref<1x4x8x8xf32, #tpu.memory_space<vmem>>, vector<1x1x8x8xf32>,
    %11 = vector.extract_strided_slice %6 {offsets = [8, 0], sizes = [8, 8], strides = [1, 1]} : vector<16x8xf32> to vector<8x8xf32>
    %c0_12 = arith.constant 0 : index
    %c1 = arith.constant 1 : index
    %c0_13 = arith.constant 0 : index
    %c0_14 = arith.constant 0 : index
    %12 = vector.load %arg5[%c0_12, %c1, %c0_13, %c0_14] : memref<1x4x8x8xf32, #tpu.memory_space<vmem>>, vector<1x1x8x8xf32>
    %13 = vector.shape_cast %12 : vector<1x1x8x8xf32> to vector<8x8xf32>
    %14 = vector.shape_cast %11 : vector<8x8xf32> to vector<1x1x8x8xf32>
    tpu.vector_store %arg5[%c0_12, %c1, %c0_13, %c0_14], %14 {strides = array<i32>} : memref<1x4x8x8xf32, #tpu.memory_space<vmem>>, vector<1x1x8x8xf32>,
    %c0_15 = arith.constant 0 : index
    %c0_16 = arith.constant 0 : index
    %c0_17 = arith.constant 0 : index
    %15 = vector.load %arg2[%c0_15, %c0_16, %c0_17] : memref<1x32x8xf32, #tpu.memory_space<vmem>>, vector<1x32x8xf32>
    %16 = vector.shape_cast %15 : vector<1x32x8xf32> to vector<32x8xf32>
    %c0_18 = arith.constant 0 : index
    %c1_19 = arith.constant 1 : index
    %c0_20 = arith.constant 0 : index
    %c0_21 = arith.constant 0 : index
    %17 = vector.load %arg3[%c0_18, %c1_19, %c0_20, %c0_21] : memref<1x2x32x8xf32, #tpu.memory_space<vmem>>, vector<1x1x32x8xf32>
    %18 = vector.shape_cast %17 : vector<1x1x32x8xf32> to vector<32x8xf32>
    %19 = arith.mulf %16, %18 : vector<32x8xf32>
    %c0_22 = arith.constant 0 : index
    %c0_23 = arith.constant 0 : index
    %20 = vector.load %arg4[%c0_22, %c0_23] : memref<16x32xf32, #tpu.memory_space<vmem>>, vector<16x32xf32>
    %cst_24 = arith.constant dense<0.000000e+00> : vector<16x8xf32>
    %21 = tpu.matmul %20, %19, %cst_24 {dimension_numbers = #tpu.dot_dimension_numbers<[1], [0], [0], [1], [0, 0, 1, 1], [], []>} : vector<16x32xf32>, vector<32x8xf32>, vector<16x8xf32> -> vector<16x8xf32>
    %22 = vector.extract_strided_slice %21 {offsets = [0, 0], sizes = [8, 8], strides = [1, 1]} : vector<16x8xf32> to vector<8x8xf32>
    %c0_25 = arith.constant 0 : index
    %c2 = arith.constant 2 : index
    %c0_26 = arith.constant 0 : index
    %c0_27 = arith.constant 0 : index
    %23 = vector.load %arg5[%c0_25, %c2, %c0_26, %c0_27] : memref<1x4x8x8xf32, #tpu.memory_space<vmem>>, vector<1x1x8x8xf32>
    %24 = vector.shape_cast %23 : vector<1x1x8x8xf32> to vector<8x8xf32>
    %25 = vector.shape_cast %22 : vector<8x8xf32> to vector<1x1x8x8xf32>
    tpu.vector_store %arg5[%c0_25, %c2, %c0_26, %c0_27], %25 {strides = array<i32>} : memref<1x4x8x8xf32, #tpu.memory_space<vmem>>, vector<1x1x8x8xf32>,
    %26 = vector.extract_strided_slice %21 {offsets = [8, 0], sizes = [8, 8], strides = [1, 1]} : vector<16x8xf32> to vector<8x8xf32>
    %c0_28 = arith.constant 0 : index
    %c3 = arith.constant 3 : index
    %c0_29 = arith.constant 0 : index
    %c0_30 = arith.constant 0 : index
    %27 = vector.load %arg5[%c0_28, %c3, %c0_29, %c0_30] : memref<1x4x8x8xf32, #tpu.memory_space<vmem>>, vector<1x1x8x8xf32>
    %28 = vector.shape_cast %27 : vector<1x1x8x8xf32> to vector<8x8xf32>
    %29 = vector.shape_cast %26 : vector<8x8xf32> to vector<1x1x8x8xf32>
    tpu.vector_store %arg5[%c0_28, %c3, %c0_29, %c0_30], %29 {strides = array<i32>} : memref<1x4x8x8xf32, #tpu.memory_space<vmem>>, vector<1x1x8x8xf32>,
    return
  }
  func.func @transform_0(%arg0: i32, %arg1: i32) -> (i32, i32, i32) {
    %c0_i32 = arith.constant 0 : i32
    %c0_i32_0 = arith.constant 0 : i32
    return %arg0, %c0_i32, %arg1 : i32, i32, i32
  }
  func.func @transform_1(%arg0: i32, %arg1: i32) -> (i32, i32, i32, i32) {
    %c0_i32 = arith.constant 0 : i32
    %c0_i32_0 = arith.constant 0 : i32
    %c0_i32_1 = arith.constant 0 : i32
    return %arg0, %c0_i32, %c0_i32_0, %arg1 : i32, i32, i32, i32
  }
  func.func @transform_2(%arg0: i32, %arg1: i32) -> (i32, i32) {
    %c0_i32 = arith.constant 0 : i32
    %c0_i32_0 = arith.constant 0 : i32
    %c0_i32_1 = arith.constant 0 : i32
    return %c0_i32, %c0_i32_0 : i32, i32
  }
  func.func @transform_3(%arg0: i32, %arg1: i32) -> (i32, i32, i32, i32) {
    %c0_i32 = arith.constant 0 : i32
    %c0_i32_0 = arith.constant 0 : i32
    %c0_i32_1 = arith.constant 0 : i32
    return %arg0, %c0_i32, %c0_i32_0, %arg1 : i32, i32, i32, i32
  }
}

</mosaic_0001>

<llo_original>
// kernel: tpu_custom_call.1
$region0: #{tpu_custom_call.1}
  #allocation0 [shape = 'u32[]', space=smem, size = 0x4, offset = 0x4, fixed_abs, tag = 'smem constant byte address 0x4 - core index']
  #allocation1 [shape = 'u32[144,128]{1,0:T(1,128)}', space=vmem, size = 0x12000, scoped, tag = 'internal scratch']
  %s0 = inlined_call_operand.vmem [shape: f32[2,32,8], index: 0, kind: input, shape index: {}]
  %s1 = inlined_call_operand.vmem [shape: f32[2,2,32,8], index: 1, kind: input, shape index: {}]
  %s2 = inlined_call_operand.vmem [shape: f32[16,32], index: 2, kind: input, shape index: {}]
  %s3 = inlined_call_operand.hbm [shape: f32[2,4,8,8], index: 3, kind: output, shape index: {}]
  %s4 = sld [smem:[#allocation0]]
  $region45: #{tpu_custom_call.1} parent=0
    _
  %s6 = ssub.s32 1, %s4
  %s7 = scalar_select 0, %s6, %s4
  $region1: #{tpu_custom_call.1} parent=0
    #allocation2 [shape = 'u8[32768]{0}', space=vmem, size = 0x8000, scoped, tag = 'output window, operand 0']
    #allocation3 [shape = 's32[2]{0}', space=sflag, size = 0x8, scoped, tag = 'scoped memory for tpu_custom_call.1']
    %8 = vsyncpa [#allocation3], 0
    %s9 = scalar_lea.sflag [#allocation3], 1
    %10 = vsyncpa %s9, 0
    loop: start=0, step=1, limit=4
    $region2: #{tpu_custom_call.1} parent=1 // loop_pre_header
      _
    $region3: #{tpu_custom_call.1} parent=1 // loop_header
      %s12 = sphi 0, %s16
      %p13 = scmp.ge.s32.totalorder %s12, 4
      %s19 = sphi 0, %s31
      %s20 = sphi 0, %s27
      %s21 = sphi 0, %s19
      %s22 = sphi 0, %s20
      %s23 = sphi 0, %s21
      %s24 = sphi 0, %s22
      %s36 = sphi 0, %s38
      %s39 = sphi 0, %s36
      %s40 = sphi 0, %s39
      %s56 = sphi 0, %s40
      %s64 = sphi 0, %s66
      %s67 = sphi 0, %s64
      %s68 = sphi 0, %s67
      %s84 = sphi 0, %s68
      %s88 = sphi 0, %s88
      %s90 = sphi 0, %s88
      %s91 = sphi 0, %s90
      %s105 = sphi 0, %s91
      %s113 = sphi 0, %s115
      %s116 = sphi 0, %s113
      %s117 = sphi 0, %s116
      %s133 = sphi 0, %s117
    $region4: #{tpu_custom_call.1} parent=1 // loop_header_branch
      %15 = sbr.rel (%p13) target = $region8
    $region5: #{tpu_custom_call.1} parent=1 // loop_body
      %s17 = ssub.s32 %s12, 1
      %s18 = ssub.s32 %s12, 2
      %s25 = sadd.s32 1, %s20
      %p26 = scmp.ge.s32.totalorder %s25, 1
      %s27 = scalar_select %p26, 0, %s25
      %s28 = sadd.s32 1, %s19
      %s29 = scalar_select %p26, %s28, %s19
      %p30 = scmp.ge.s32.totalorder %s29, 2
      %s31 = scalar_select %p30, 0, %s29
      %s32 = ssub.s32 %s19, %s31
      %s33 = ssub.s32 %s20, %s27
      %s34 = sor.u32 %s32, %s33
      %p35 = scmp.eq.s32.totalorder %s34, 0
      %s37 = sadd.s32 %s36, 1
      %s38 = scalar_select %p35, %s36, %s37
      %p41 = pneg %p35
      %p42 = scmp.eq.s32.totalorder %s12, 1
      %p43 = por %p41, %p42
      %p44 = scmp.ne.s32.totalorder %s36, %s39
      %p45 = scmp.eq.s32.totalorder %s12, 0
      %p46 = por %p44, %p45
      %p47 = scmp.ne.s32.totalorder %s36, %s39
      %p48 = scmp.eq.s32.totalorder %s17, 1
      %p49 = por %p47, %p48
      %p50 = scmp.ne.s32.totalorder %s39, %s40
      %p51 = scmp.eq.s32.totalorder %s17, 0
      %p52 = por %p50, %p51
      %p53 = scmp.ne.s32.totalorder %s39, %s40
      %p54 = scmp.eq.s32.totalorder %s18, 1
      %p55 = por %p53, %p54
      %p57 = scmp.ne.s32.totalorder %s40, %s56
      %p58 = scmp.eq.s32.totalorder %s18, 0
      %p59 = por %p57, %p58
      %s60 = ssub.s32 %s19, %s31
      %s61 = ssub.s32 %s20, %s27
      %s62 = sor.u32 %s60, %s61
      %p63 = scmp.eq.s32.totalorder %s62, 0
      %s65 = sadd.s32 %s64, 1
      %s66 = scalar_select %p63, %s64, %s65
      %p69 = pneg %p63
      %p70 = scmp.eq.s32.totalorder %s12, 1
      %p71 = por %p69, %p70
      %p72 = scmp.ne.s32.totalorder %s64, %s67
      %p73 = scmp.eq.s32.totalorder %s12, 0
      %p74 = por %p72, %p73
      %p75 = scmp.ne.s32.totalorder %s64, %s67
      %p76 = scmp.eq.s32.totalorder %s17, 1
      %p77 = por %p75, %p76
      %p78 = scmp.ne.s32.totalorder %s67, %s68
      %p79 = scmp.eq.s32.totalorder %s17, 0
      %p80 = por %p78, %p79
      %p81 = scmp.ne.s32.totalorder %s67, %s68
      %p82 = scmp.eq.s32.totalorder %s18, 1
      %p83 = por %p81, %p82
      %p85 = scmp.ne.s32.totalorder %s68, %s84
      %p86 = scmp.eq.s32.totalorder %s18, 0
      %p87 = por %p85, %p86
      %s89 = sadd.s32 %s88, 1
      %p92 = scmp.eq.s32.totalorder %s12, 1
      %p93 = scmp.ne.s32.totalorder %s88, %s90
      %p94 = scmp.eq.s32.totalorder %s12, 0
      %p95 = por %p93, %p94
      %p96 = scmp.ne.s32.totalorder %s88, %s90
      %p97 = scmp.eq.s32.totalorder %s17, 1
      %p98 = por %p96, %p97
      %p99 = scmp.ne.s32.totalorder %s90, %s91
      %p100 = scmp.eq.s32.totalorder %s17, 0
      %p101 = por %p99, %p100
      %p102 = scmp.ne.s32.totalorder %s90, %s91
      %p103 = scmp.eq.s32.totalorder %s18, 1
      %p104 = por %p102, %p103
      %p106 = scmp.ne.s32.totalorder %s91, %s105
      %p107 = scmp.eq.s32.totalorder %s18, 0
      %p108 = por %p106, %p107
      %s109 = ssub.s32 %s19, %s31
      %s110 = ssub.s32 %s20, %s27
      %s111 = sor.u32 %s109, %s110
      %p112 = scmp.eq.s32.totalorder %s111, 0
      %s114 = sadd.s32 %s113, 1
      %s115 = scalar_select %p112, %s113, %s114
      %p118 = pneg %p112
      %p119 = scmp.eq.s32.totalorder %s12, 1
      %p120 = por %p118, %p119
      %p121 = scmp.ne.s32.totalorder %s113, %s116
      %p122 = scmp.eq.s32.totalorder %s12, 0
      %p123 = por %p121, %p122
      %p124 = scmp.ne.s32.totalorder %s113, %s116
      %p125 = scmp.eq.s32.totalorder %s17, 1
      %p126 = por %p124, %p125
      %p127 = scmp.ne.s32.totalorder %s116, %s117
      %p128 = scmp.eq.s32.totalorder %s17, 0
      %p129 = por %p127, %p128
      %p130 = scmp.ne.s32.totalorder %s116, %s117
      %p131 = scmp.eq.s32.totalorder %s18, 1
      %p132 = por %p130, %p131
      %p134 = scmp.ne.s32.totalorder %s117, %s133
      %p135 = scmp.eq.s32.totalorder %s18, 0
      %p136 = por %p134, %p135
      %p137 = scmp.le.s32.totalorder 1, %s12
      %p138 = scmp.lt.s32.totalorder %s12, 3
      %p139 = pnand %p137, %p138
      %p140 = pneg %p139
      // Predicated region
      $region9: #{tpu_custom_call.1} parent=5 // pred_check
        _
      $region10: #{tpu_custom_call.1} parent=5 // pred_check_branch
        %142 = sbr.rel (%p139) target = $region12
      $region11: #{tpu_custom_call.1} parent=5 // pred_region
        %s143 = ssub.s32 %s12, 1
        // Predicated region
        $region13: #{tpu_custom_call.1} parent=11 // pred_check
          %p144 = pneg %p101
        $region14: #{tpu_custom_call.1} parent=11 // pred_check_branch
          %146 = sbr.rel (%p144) target = $region16
        $region15: #{tpu_custom_call.1} parent=11 // pred_region
          _
        $region16: #{tpu_custom_call.1} parent=11 // pred_fallthru
          _
      $region12: #{tpu_custom_call.1} parent=5 // pred_fallthru
        _
      %p147 = scmp.lt.s32.totalorder %s12, 2
      // Predicated region
      $region17: #{tpu_custom_call.1} parent=5 // pred_check
        %p148 = pneg %p147
      $region18: #{tpu_custom_call.1} parent=5 // pred_check_branch
        %150 = sbr.rel (%p148) target = $region20
      $region19: #{tpu_custom_call.1} parent=5 // pred_region
        // Predicated region
        $region21: #{tpu_custom_call.1} parent=19 // pred_check
          %p151 = pneg %p46
        $region22: #{tpu_custom_call.1} parent=19 // pred_check_branch
          %153 = sbr.rel (%p151) target = $region24
        $region23: #{tpu_custom_call.1} parent=19 // pred_region
          %p154 = scmp.lt.s32.totalorder %s19, 1
          %s155 = scalar_select %p154, %s19, 1
          %p156 = scmp.lt.s32.totalorder %s20, 0
          %s157 = scalar_select %p156, %s20, 0
          %s158 = smul.addr %s155, 4
          %s159 = sadd.s32 %s157, %s158
          %s160 = smul.addr %s159, 8
          %s161 = scalar_lea.vmem %s0, %s160
        $region24: #{tpu_custom_call.1} parent=19 // pred_fallthru
          _
        // Predicated region
        $region25: #{tpu_custom_call.1} parent=19 // pred_check
          %p162 = pneg %p74
        $region26: #{tpu_custom_call.1} parent=19 // pred_check_branch
          %164 = sbr.rel (%p162) target = $region28
        $region27: #{tpu_custom_call.1} parent=19 // pred_region
          %p165 = scmp.lt.s32.totalorder %s19, 1
          %s166 = scalar_select %p165, %s19, 1
          %p167 = scmp.lt.s32.totalorder %s20, 0
          %s168 = scalar_select %p167, %s20, 0
          %s169 = smul.addr %s166, 8
          %s170 = sadd.s32 %s168, %s169
          %s171 = smul.addr %s170, 8
          %s172 = scalar_lea.vmem %s1, %s171
        $region28: #{tpu_custom_call.1} parent=19 // pred_fallthru
          _
      $region20: #{tpu_custom_call.1} parent=5 // pred_fallthru
        _
      %p173 = scmp.le.s32.totalorder 1, %s12
      %p174 = scmp.lt.s32.totalorder %s12, 3
      %p175 = pnand %p173, %p174
      %p176 = pneg %p175
      // Predicated region
      $region29: #{tpu_custom_call.1} parent=5 // pred_check
        _
      $region30: #{tpu_custom_call.1} parent=5 // pred_check_branch
        %178 = sbr.rel (%p175) target = $region32
      $region31: #{tpu_custom_call.1} parent=5 // pred_region
        %s179 = ssub.s32 %s12, 1
        %p180 = scmp.lt.s32.totalorder %s21, 1
        %s181 = scalar_select %p180, %s21, 1
        %p182 = scmp.lt.s32.totalorder %s22, 0
        %s183 = scalar_select %p182, %s22, 0
        %s184 = smul.addr %s181, 4
        %s185 = sadd.s32 %s183, %s184
        %s186 = smul.addr %s185, 8
        %s187 = scalar_lea.vmem %s0, %s186
        %p188 = pneg %p52
        %p189 = pneg %p49
        %p190 = scmp.lt.s32.totalorder %s21, 1
        %s191 = scalar_select %p190, %s21, 1
        %p192 = scmp.lt.s32.totalorder %s22, 0
        %s193 = scalar_select %p192, %s22, 0
        %s194 = smul.addr %s191, 8
        %s195 = sadd.s32 %s193, %s194
        %s196 = smul.addr %s195, 8
        %s197 = scalar_lea.vmem %s1, %s196
        %p198 = pneg %p80
        %p199 = pneg %p77
        %p200 = pneg %p101
        %p201 = pneg %p98
        %p202 = pneg %p129
        %p203 = pneg %p126
        %s204 = sand.u32 %s116, 1
        %s205 = scalar_lea.sflag [#allocation3], %s204
        %s206 = sand.u32 %s116, 1
        %s207 = smul.addr %s206, 32
        %s208 = scalar_lea.vmem [#allocation2], %s207
        %p209 = scmp.lt.s32.totalorder %s21, 1
        %s210 = scalar_select %p209, %s21, 1
        %p211 = scmp.lt.s32.totalorder %s22, 0
        %s212 = scalar_select %p211, %s22, 0
        %s213 = smul.addr %s210, 4
        %s214 = sadd.s32 %s212, %s213
        %s215 = smul.addr %s214, 8
        %s216 = scalar_lea.vmem %s0, %s215
        %p217 = scmp.lt.s32.totalorder %s21, 1
        %s218 = scalar_select %p217, %s21, 1
        %p219 = scmp.lt.s32.totalorder %s22, 0
        %s220 = scalar_select %p219, %s22, 0
        %s221 = smul.addr %s218, 8
        %s222 = sadd.s32 %s220, %s221
        %s223 = smul.addr %s222, 8
        %s224 = scalar_lea.vmem %s1, %s223
        %v225 = vld [vmem:[%s216] sm:$0xff]
        %v226 = vld [vmem:[%s216 + $0x8] sm:$0xff]
        %v227 = vld [vmem:[%s216 + $0x10] sm:$0xff]
        %v228 = vld [vmem:[%s216 + $0x18] sm:$0xff]
        %v229 = vld [vmem:[%s224] sm:$0xff]
        %v230 = vld [vmem:[%s224 + $0x8] sm:$0xff]
        %v231 = vld [vmem:[%s224 + $0x10] sm:$0xff]
        %v232 = vld [vmem:[%s224 + $0x18] sm:$0xff]
        %v233 = vmul.f32 %v225, %v229
        %v234 = vmul.f32 %v226, %v230
        %v235 = vmul.f32 %v227, %v231
        %v236 = vmul.f32 %v228, %v232
        %v237 = vld [vmem:[%s2] sm:$0xff]
        %v238 = vld [vmem:[%s2 + $0x8] sm:$0xff]
        %vm239 = vcmask 261120
        %v241 = vsel %vm239, %v237, 0
        %v244 = vsel %vm239, %v238, 0
        %246 = vmatprep.subr.mxu0 0.0
        %247 = vmatpush1.msra.mxu0 %v233
        %248 = vmatprep.subr.mxu0 0.0
        %249 = vmatpush1.msra.mxu0 %v234
        %250 = vmatprep.subr.mxu0 0.0
        %251 = vmatpush1.msra.mxu0 %v235
        %252 = vmatprep.subr.mxu0 0.0
        %253 = vmatpush1.msra.mxu0 %v236
        %254 = vmatprep.subr.mxu0 0.0
        %255 = vmatpush1.msra.mxu0 0.0
        %256 = vmatprep.subr.mxu0 0.0
        %257 = vmatpush1.msra.mxu0 0.0
        %258 = vmatprep.subr.mxu0 0.0
        %259 = vmatpush1.msra.mxu0 0.0
        %260 = vmatprep.subr.mxu0 0.0
        %261 = vmatpush1.msra.mxu0 0.0
        %262 = vmatprep.subr.mxu0 0.0
        %263 = vmatpush1.msra.mxu0 0.0
        %264 = vmatprep.subr.mxu0 0.0
        %265 = vmatpush1.msra.mxu0 0.0
        %266 = vmatprep.subr.mxu0 0.0
        %267 = vmatpush1.msra.mxu0 0.0
        %268 = vmatprep.subr.mxu0 0.0
        %269 = vmatpush1.msra.mxu0 0.0
        %270 = vmatprep.subr.mxu0 0.0
        %271 = vmatpush1.msra.mxu0 0.0
        %272 = vmatprep.subr.mxu0 0.0
        %273 = vmatpush1.msra.mxu0 0.0
        %274 = vmatprep.subr.mxu0 0.0
        %275 = vmatpush1.msra.mxu0 0.0
        %276 = vmatprep.subr.mxu0 0.0
        %277 = vmatpush1.msra.mxu0 0.0
        %278 = vmatprep.subr.mxu0 0.0
        %279 = vmatpush1.msra.mxu0 0.0
        %280 = vmatprep.subr.mxu0 0.0
        %281 = vmatpush1.msra.mxu0 0.0
        %282 = vmatprep.subr.mxu0 0.0
        %283 = vmatpush1.msra.mxu0 0.0
        %284 = vmatprep.subr.mxu0 0.0
        %285 = vmatpush1.msra.mxu0 0.0
        %286 = vmatprep.subr.mxu0 0.0
        %287 = vmatpush1.msra.mxu0 0.0
        %288 = vmatprep.subr.mxu0 0.0
        %289 = vmatpush1.msra.mxu0 0.0
        %290 = vmatprep.subr.mxu0 0.0
        %291 = vmatpush1.msra.mxu0 0.0
        %292 = vmatprep.subr.mxu0 0.0
        %293 = vmatpush1.msra.mxu0 0.0
        %294 = vmatprep.subr.mxu0 0.0
        %295 = vmatpush1.msra.mxu0 0.0
        %296 = vmatprep.subr.mxu0 0.0
        %297 = vmatpush1.msra.mxu0 0.0
        %298 = vmatprep.subr.mxu0 0.0
        %299 = vmatpush1.msra.mxu0 0.0
        %300 = vmatprep.subr.mxu0 0.0
        %301 = vmatpush1.msra.mxu0 0.0
        %302 = vmatprep.subr.mxu0 0.0
        %303 = vmatpush1.msra.mxu0 0.0
        %304 = vmatprep.subr.mxu0 0.0
        %305 = vmatpush1.msra.mxu0 0.0
        %306 = vmatprep.subr.mxu0 0.0
        %307 = vmatpush1.msra.mxu0 0.0
        %308 = vmatprep.subr.mxu0 0.0
        %309 = vmatpush1.msra.mxu0 0.0
        %310 = vmatprep.mubr.f32.mxu0 0.0
        %311 = vmatmul.mubr.f32.gmra.mrb[0].mxu0 %v241
        %v312 = vpop.f32.mrb[0].mxu0
        %v313 = vadd.f32 0.0, %v312
        %v314 = vpop.f32.mrb[0].mxu0
        %315 = vmatprep.mubr.f32.mxu0 0.0
        %316 = vmatmul.mubr.f32.gmra.mrb[0].mxu0 %v244
        %v317 = vpop.f32.mrb[0].mxu0
        %v318 = vadd.f32 0.0, %v317
        %v319 = vpop.f32.mrb[0].mxu0
        %320 = vdwg.mxu0
        %vm321 = vcmask 64512
        %322 = vst.msk [vmem:[%s208] sm:$0xff] %vm321, %v313
        %s323 = scalar_lea.vmem %s208, 8 [#allocation2]
        %324 = vst.msk [vmem:[%s323] sm:$0xff] %vm321, %v318
        %v325 = vld [vmem:[%s216] sm:$0xff]
        %v326 = vld [vmem:[%s216 + $0x8] sm:$0xff]
        %v327 = vld [vmem:[%s216 + $0x10] sm:$0xff]
        %v328 = vld [vmem:[%s216 + $0x18] sm:$0xff]
        %s329 = scalar_lea.vmem %s224, 32
        %v330 = vld [vmem:[%s329] sm:$0xff]
        %v331 = vld [vmem:[%s329 + $0x8] sm:$0xff]
        %v332 = vld [vmem:[%s329 + $0x10] sm:$0xff]
        %v333 = vld [vmem:[%s329 + $0x18] sm:$0xff]
        %v334 = vmul.f32 %v325, %v330
        %v335 = vmul.f32 %v326, %v331
        %v336 = vmul.f32 %v327, %v332
        %v337 = vmul.f32 %v328, %v333
        %v338 = vld [vmem:[%s2] sm:$0xff]
        %v339 = vld [vmem:[%s2 + $0x8] sm:$0xff]
        %v341 = vsel %vm239, %v338, 0
        %v344 = vsel %vm239, %v339, 0
        %346 = vmatprep.subr.mxu0 0.0
        %347 = vmatpush1.msra.mxu0 %v334
        %348 = vmatprep.subr.mxu0 0.0
        %349 = vmatpush1.msra.mxu0 %v335
        %350 = vmatprep.subr.mxu0 0.0
        %351 = vmatpush1.msra.mxu0 %v336
        %352 = vmatprep.subr.mxu0 0.0
        %353 = vmatpush1.msra.mxu0 %v337
        %354 = vmatprep.subr.mxu0 0.0
        %355 = vmatpush1.msra.mxu0 0.0
        %356 = vmatprep.subr.mxu0 0.0
        %357 = vmatpush1.msra.mxu0 0.0
        %358 = vmatprep.subr.mxu0 0.0
        %359 = vmatpush1.msra.mxu0 0.0
        %360 = vmatprep.subr.mxu0 0.0
        %361 = vmatpush1.msra.mxu0 0.0
        %362 = vmatprep.subr.mxu0 0.0
        %363 = vmatpush1.msra.mxu0 0.0
        %364 = vmatprep.subr.mxu0 0.0
        %365 = vmatpush1.msra.mxu0 0.0
        %366 = vmatprep.subr.mxu0 0.0
        %367 = vmatpush1.msra.mxu0 0.0
        %368 = vmatprep.subr.mxu0 0.0
        %369 = vmatpush1.msra.mxu0 0.0
        %370 = vmatprep.subr.mxu0 0.0
        %371 = vmatpush1.msra.mxu0 0.0
        %372 = vmatprep.subr.mxu0 0.0
        %373 = vmatpush1.msra.mxu0 0.0
        %374 = vmatprep.subr.mxu0 0.0
        %375 = vmatpush1.msra.mxu0 0.0
        %376 = vmatprep.subr.mxu0 0.0
        %377 = vmatpush1.msra.mxu0 0.0
        %378 = vmatprep.subr.mxu0 0.0
        %379 = vmatpush1.msra.mxu0 0.0
        %380 = vmatprep.subr.mxu0 0.0
        %381 = vmatpush1.msra.mxu0 0.0
        %382 = vmatprep.subr.mxu0 0.0
        %383 = vmatpush1.msra.mxu0 0.0
        %384 = vmatprep.subr.mxu0 0.0
        %385 = vmatpush1.msra.mxu0 0.0
        %386 = vmatprep.subr.mxu0 0.0
        %387 = vmatpush1.msra.mxu0 0.0
        %388 = vmatprep.subr.mxu0 0.0
        %389 = vmatpush1.msra.mxu0 0.0
        %390 = vmatprep.subr.mxu0 0.0
        %391 = vmatpush1.msra.mxu0 0.0
        %392 = vmatprep.subr.mxu0 0.0
        %393 = vmatpush1.msra.mxu0 0.0
        %394 = vmatprep.subr.mxu0 0.0
        %395 = vmatpush1.msra.mxu0 0.0
        %396 = vmatprep.subr.mxu0 0.0
        %397 = vmatpush1.msra.mxu0 0.0
        %398 = vmatprep.subr.mxu0 0.0
        %399 = vmatpush1.msra.mxu0 0.0
        %400 = vmatprep.subr.mxu0 0.0
        %401 = vmatpush1.msra.mxu0 0.0
        %402 = vmatprep.subr.mxu0 0.0
        %403 = vmatpush1.msra.mxu0 0.0
        %404 = vmatprep.subr.mxu0 0.0
        %405 = vmatpush1.msra.mxu0 0.0
        %406 = vmatprep.subr.mxu0 0.0
        %407 = vmatpush1.msra.mxu0 0.0
        %408 = vmatprep.subr.mxu0 0.0
        %409 = vmatpush1.msra.mxu0 0.0
        %410 = vmatprep.mubr.f32.mxu0 0.0
        %411 = vmatmul.mubr.f32.gmra.mrb[0].mxu0 %v341
        %v412 = vpop.f32.mrb[0].mxu0
        %v413 = vadd.f32 0.0, %v412
        %v414 = vpop.f32.mrb[0].mxu0
        %415 = vmatprep.mubr.f32.mxu0 0.0
        %416 = vmatmul.mubr.f32.gmra.mrb[0].mxu0 %v344
        %v417 = vpop.f32.mrb[0].mxu0
        %v418 = vadd.f32 0.0, %v417
        %v419 = vpop.f32.mrb[0].mxu0
        %420 = vdwg.mxu0
        %s421 = scalar_lea.vmem %s208, 16 [#allocation2]
        %422 = vst.msk [vmem:[%s421] sm:$0xff] %vm321, %v413
        %s423 = scalar_lea.vmem %s208, 24 [#allocation2]
        %424 = vst.msk [vmem:[%s423] sm:$0xff] %vm321, %v418
        %s425 = sand.u32 %s116, 1
        %s426 = scalar_lea.sflag [#allocation3], %s425
        %s427 = sand.u32 %s116, 1
        %s428 = smul.addr %s427, 32
        %s429 = scalar_lea.vmem [#allocation2], %s428
        // Predicated region
        $region33: #{tpu_custom_call.1} parent=31 // pred_check
          %p430 = pneg %p126
        $region34: #{tpu_custom_call.1} parent=31 // pred_check_branch
          %432 = sbr.rel (%p430) target = $region36
        $region35: #{tpu_custom_call.1} parent=31 // pred_region
          %s434 = ssub.s32 512, 512
          %435 = vsyncadd %s426, %s434
          %s436 = smul.addr %s21, 4
          %s437 = sadd.s32 %s22, %s436
          %s438 = smul.addr %s437, 128
          %s439 = scalar_lea.hbm %s3, %s438
          %s440 = sshll.u32 %s429, 4
          %s441 = int_to_ptr.vmem [resolvable:$true] %s440
          %446 = dma.vmem_to_hbm [thread:$0]  %s441, 512, %s439, %s426, 128, 128, 8
        $region36: #{tpu_custom_call.1} parent=31 // pred_fallthru
          _
      $region32: #{tpu_custom_call.1} parent=5 // pred_fallthru
        _
      %p447 = scmp.le.s32.totalorder 2, %s12
      // Predicated region
      $region37: #{tpu_custom_call.1} parent=5 // pred_check
        %p448 = pneg %p447
      $region38: #{tpu_custom_call.1} parent=5 // pred_check_branch
        %450 = sbr.rel (%p448) target = $region40
      $region39: #{tpu_custom_call.1} parent=5 // pred_region
        %s451 = ssub.s32 %s12, 2
        // Predicated region
        $region41: #{tpu_custom_call.1} parent=39 // pred_check
          %p452 = pneg %p132
        $region42: #{tpu_custom_call.1} parent=39 // pred_check_branch
          %454 = sbr.rel (%p452) target = $region44
        $region43: #{tpu_custom_call.1} parent=39 // pred_region
          %s455 = sand.u32 %s117, 1
          %s456 = scalar_lea.sflag [#allocation3], %s455
          %s457 = sand.u32 %s117, 1
          %s458 = smul.addr %s457, 32
          %s459 = scalar_lea.vmem [#allocation2], %s458
          %460 = dma.done %s456, 512
        $region44: #{tpu_custom_call.1} parent=39 // pred_fallthru
          _
      $region40: #{tpu_custom_call.1} parent=5 // pred_fallthru
        _
    $region6: #{tpu_custom_call.1} parent=1 // loop_footer
      %s16 = sadd.s32 1, %s12
    $region7: #{tpu_custom_call.1} parent=1 // loop_footer_branch
      %11 = sbr.rel target = $region3
    $region8: #{tpu_custom_call.1} parent=1 // loop_exit
      _
    %461 = vsyncpa [#allocation3], 1
    %s462 = scalar_lea.sflag [#allocation3], 1
    %463 = vsyncpa %s462, 1

</llo_original>
